<compile_context>
chip_gen: v6e
topology: v6e:2x2x1
jax: 0.10.0
libtpu: 0.0.40
codegen_flags: <defaults>
</compile_context>

<pallas_src>
import functools
from collections import namedtuple

import numpy as np

import jax
import jax.numpy as jnp
from jax.experimental import pallas as pl
from jax.experimental.pallas import tpu as pltpu


# -----------------------------------------------------------------------------
# helpers
# -----------------------------------------------------------------------------
def _round_up(n, m):
    return ((n + m - 1) // m) * m


def _cdiv(a, b):
    return -(-a // b)


Layout = namedtuple("Layout", "ins outs k_pads n_pads offs vrow0 rows cols vmax")


def _slab_layout(dims):
    """Static packing layout for the merged parameter slab."""
    state_dim, hidden, h2, h4, action_dim = dims
    ins = (state_dim, hidden, hidden, hidden, h2, h4)
    outs = (hidden, hidden, hidden, h2, h4, action_dim)
    k_pads = tuple(_round_up(i, 128) for i in ins)      # matmul K per layer
    n_pads = tuple(_round_up(o, 128) for o in outs)     # lane-dense out width
    offs = tuple(int(sum(n_pads[:i])) for i in range(6))
    vrow0 = max(k_pads)                                 # vector rows start here
    rows = vrow0 + 16                                   # 16 bias/gamma/beta rows
    cols = int(sum(n_pads))
    vmax = max(n_pads)
    return Layout(ins, outs, k_pads, n_pads, offs, vrow0, rows, cols, vmax)


def _mm(a, b):
    return jnp.dot(a, b, precision=jax.lax.Precision.HIGHEST)


def _layernorm(x, gamma, beta, eps=1e-5):
    # PyTorch LayerNorm: biased variance, eps inside rsqrt, affine params.
    mu = jnp.mean(x, axis=-1, keepdims=True)
    var = jnp.mean((x - mu) ** 2, axis=-1, keepdims=True)
    return (x - mu) * jax.lax.rsqrt(var + eps) * gamma + beta


# -----------------------------------------------------------------------------
# kernel
# -----------------------------------------------------------------------------
def _actor_kernel(x_ref, slab_ref, o_ref, *, layout):
    ins, outs, k_pads, n_pads, offs, vrow0 = (
        layout.ins, layout.outs, layout.k_pads, layout.n_pads, layout.offs,
        layout.vrow0)
    eps = 1e-5

    def masked_norm(h, d, n):
        """LayerNorm statistics over the first `d` of `n` lanes (rest are 0)."""
        inv_d = 1.0 / d
        mu = jnp.sum(h, axis=-1, keepdims=True) * inv_d
        diff = h - mu
        if d < n:                       # zero the padded lanes before the
            lane = jax.lax.broadcasted_iota(jnp.int32, diff.shape, 1)
            diff = jnp.where(lane < d, diff, 0.0)
        var = jnp.sum(diff * diff, axis=-1, keepdims=True) * inv_d
        return diff * jax.lax.rsqrt(var + eps)   # padded lanes stay exactly 0

    # Input LayerNorm — its affine (gamma0, beta0) was folded into (W1, b1).
    x = x_ref[...]                                   # (tb, 128); pad lanes = 0
    h = masked_norm(x, ins[0], x.shape[-1])

    # 5 hidden blocks: Linear -> LayerNorm -> ReLU (Dropout == identity, eval).
    for li in range(5):
        k, n, d_out, off = k_pads[li], n_pads[li], outs[li], offs[li]
        w = slab_ref[0:k, off:off + n]               # zero-padded [K, 128*m]
        b = slab_ref[vrow0 + 3 * li + 0:vrow0 + 3 * li + 1, 0:n]
        g = slab_ref[vrow0 + 3 * li + 1:vrow0 + 3 * li + 2, 0:n]
        be = slab_ref[vrow0 + 3 * li + 2:vrow0 + 3 * li + 3, 0:n]
        h = jnp.dot(h, w, preferred_element_type=jnp.float32) + b
        h = masked_norm(h, d_out, n) * g + be        # pad lanes: 0*0 + 0 = 0
        h = jnp.maximum(h, 0.0)

    # Output head + tanh — lane-dense (tb, 128) store; extra lanes stay 0.
    k, n, off = k_pads[5], n_pads[5], offs[5]
    w = slab_ref[0:k, off:off + n]
    b = slab_ref[vrow0 + 15:vrow0 + 16, 0:n]
    h = jnp.dot(h, w, preferred_element_type=jnp.float32) + b
    o_ref[...] = jnp.tanh(h)


# -----------------------------------------------------------------------------
# wrapper
# -----------------------------------------------------------------------------
def triple_pendulum_actor(x, slab, *, dims, block_batch=1024):
    """x: [B, state_dim] f32.  slab: packed params from pack_params()."""
    state_dim, hidden, h2, h4, action_dim = dims
    layout = _slab_layout(dims)
    in_pad = layout.k_pads[0]        # lane-dense input width (>=128)
    out_pad = layout.n_pads[5]       # lane-dense output width (128)

    batch = x.shape[0]
    b8 = _round_up(batch, 8)
    if b8 <= 64:
        # Tiny batch: fixed per-call overhead dominates; single grid step.
        tb, grid_n = b8, 1
    else:
        # Large tiles (few ~0.35 µs grid steps) and an EVEN grid (>=2) so v7x
        # can split rows across its two TensorCores; weights stay VMEM-resident.
        grid_n = max(2, _cdiv(b8, block_batch))
        if grid_n % 2:
            grid_n += 1
        tb = _round_up(_cdiv(b8, grid_n), 8)
    b_pad = tb * grid_n

    x = jnp.pad(x.astype(jnp.float32),
                ((0, b_pad - batch), (0, in_pad - state_dim)))

    flops = 2 * b_pad * sum(i * o for i, o in zip(layout.ins, layout.outs))
    transcendentals = b_pad * (6 + action_dim)       # 6 rsqrt passes + tanh
    bytes_accessed = 4 * (b_pad * in_pad + int(slab.size) + b_pad * out_pad)

    kernel = functools.partial(_actor_kernel, layout=layout)
    out = pl.pallas_call(
        kernel,
        out_shape=jax.ShapeDtypeStruct((b_pad, out_pad), jnp.float32),
        grid=(grid_n,),
        in_specs=[
            pl.BlockSpec((tb, in_pad), lambda i: (i, 0)),
            # Merged parameter slab: constant index_map => resident across grid.
            pl.BlockSpec(slab.shape, lambda i: (0, 0)),
        ],
        out_specs=pl.BlockSpec((tb, out_pad), lambda i: (i, 0)),
        compiler_params=pltpu.CompilerParams(
            dimension_semantics=("parallel",),
            vmem_limit_bytes=16 * 1024 * 1024,
        ),
        cost_estimate=pl.CostEstimate(
            flops=flops,
            transcendentals=transcendentals,
            bytes_accessed=bytes_accessed,
        ),
    )(x, slab)
    return out[:batch, :action_dim]


# -----------------------------------------------------------------------------
# host-side parameter packing (fold input-LN affine + build single slab)
# -----------------------------------------------------------------------------
def pack_params(params, state_dim, action_dim, hidden_dim):
    (ln0_g, ln0_b,
     w1, b1, ln1_g, ln1_b,
     w2, b2, ln2_g, ln2_b,
     w3, b3, ln3_g, ln3_b,
     w4, b4, ln4_g, ln4_b,
     w5, b5, ln5_g, ln5_b,
     wo, bo) = params
    h2, h4 = hidden_dim // 2, hidden_dim // 4
    dims = (state_dim, hidden_dim, h2, h4, action_dim)
    layout = _slab_layout(dims)

    # Fold input LayerNorm affine into layer 1:
    #   LN0(x) @ W1 + b1 == xhat @ (g0[:,None] * W1) + (b0 @ W1 + b1)
    w1f = jnp.reshape(ln0_g, (-1, 1)) * w1                  # [state_dim, hidden]
    b1f = b1 + jnp.reshape(ln0_b, (1, -1)) @ w1             # [1, hidden]

    slab = np.zeros((layout.rows, layout.cols), np.float32)

    weights = (w1f, w2, w3, w4, w5, wo)
    for w, off in zip(weights, layout.offs):
        di, do = w.shape
        slab[:di, off:off + do] = np.asarray(w, np.float32)

    vectors = (b1f, ln1_g, ln1_b,
               b2, ln2_g, ln2_b,
               b3, ln3_g, ln3_b,
               b4, ln4_g, ln4_b,
               b5, ln5_g, ln5_b,
               bo)
    for i, v in enumerate(vectors):
        flat = np.asarray(v, np.float32).reshape(-1)
        slab[layout.vrow0 + i, :flat.shape[0]] = flat

    return jnp.asarray(slab), dims


# -----------------------------------------------------------------------------
# deterministic parameter init (mirrors shapes / init style of the PyTorch module)
# -----------------------------------------------------------------------------
def _orthogonal(key, out_f, in_f, gain):
    n, m = max(out_f, in_f), min(out_f, in_f)
    a = jax.random.normal(key, (n, m), dtype=jnp.float32)
    q, r = jnp.linalg.qr(a)
    q = q * jnp.sign(jnp.diagonal(r))[None, :]
    w = q if (out_f >= in_f) else q.T                       # (out_f, in_f)
    w = w.reshape(out_f, in_f)
    return (gain * w).T                                     # stored as [in, out]


def _init_params(key, state_dim, action_dim, hidden_dim):
    h2, h4 = hidden_dim // 2, hidden_dim // 4
    keys = jax.random.split(key, 6)

    def ln_params(d):
        return jnp.ones((1, d), jnp.float32), jnp.zeros((1, d), jnp.float32)

    ln0_g, ln0_b = ln_params(state_dim)
    w1 = _orthogonal(keys[0], hidden_dim, state_dim, 1.414)
    b1 = jnp.zeros((1, hidden_dim), jnp.float32)
    ln1_g, ln1_b = ln_params(hidden_dim)
    w2 = _orthogonal(keys[1], hidden_dim, hidden_dim, 1.414)
    b2 = jnp.zeros((1, hidden_dim), jnp.float32)
    ln2_g, ln2_b = ln_params(hidden_dim)
    w3 = _orthogonal(keys[2], hidden_dim, hidden_dim, 1.414)
    b3 = jnp.zeros((1, hidden_dim), jnp.float32)
    ln3_g, ln3_b = ln_params(hidden_dim)
    w4 = _orthogonal(keys[3], h2, hidden_dim, 1.414)
    b4 = jnp.zeros((1, h2), jnp.float32)
    ln4_g, ln4_b = ln_params(h2)
    w5 = _orthogonal(keys[4], h4, h2, 1.414)
    b5 = jnp.zeros((1, h4), jnp.float32)
    ln5_g, ln5_b = ln_params(h4)
    wo = _orthogonal(keys[5], action_dim, h4, 0.01)
    bo = jnp.zeros((1, action_dim), jnp.float32)

    return (ln0_g, ln0_b,
            w1, b1, ln1_g, ln1_b,
            w2, b2, ln2_g, ln2_b,
            w3, b3, ln3_g, ln3_b,
            w4, b4, ln4_g, ln4_b,
            w5, b5, ln5_g, ln5_b,
            wo, bo)


def _randomize_affine(params, key):
    """Random LN gammas/betas and biases (weights unchanged) so the packing and
    input-norm folding paths are actually exercised by the correctness check."""
    weight_idx = {2, 6, 10, 14, 18, 22}
    gamma_idx = {0, 4, 8, 12, 16, 20}
    keys = jax.random.split(key, len(params))
    out = []
    for i, (p, k) in enumerate(zip(params, keys)):
        if i in weight_idx:
            out.append(p)
        elif i in gamma_idx:
            out.append(1.0 + 0.3 * jax.random.normal(k, p.shape, p.dtype))
        else:
            out.append(0.3 * jax.random.normal(k, p.shape, p.dtype))
    return tuple(out)


# -----------------------------------------------------------------------------
# pure-JAX references (eval-mode forward)
# -----------------------------------------------------------------------------
def _reference(x, params):
    (ln0_g, ln0_b,
     w1, b1, ln1_g, ln1_b,
     w2, b2, ln2_g, ln2_b,
     w3, b3, ln3_g, ln3_b,
     w4, b4, ln4_g, ln4_b,
     w5, b5, ln5_g, ln5_b,
     wo, bo) = params

    h = _layernorm(x, ln0_g, ln0_b)
    h = jnp.maximum(_layernorm(_mm(h, w1) + b1, ln1_g, ln1_b), 0.0)
    h = jnp.maximum(_layernorm(_mm(h, w2) + b2, ln2_g, ln2_b), 0.0)
    h = jnp.maximum(_layernorm(_mm(h, w3) + b3, ln3_g, ln3_b), 0.0)
    h = jnp.maximum(_layernorm(_mm(h, w4) + b4, ln4_g, ln4_b), 0.0)
    h = jnp.maximum(_layernorm(_mm(h, w5) + b5, ln5_g, ln5_b), 0.0)
    return jnp.tanh(_mm(h, wo) + bo)


def _reference_folded(x, params):
    """Same math as the kernel's folded form (LN0 affine absorbed into W1/b1):
    lets the packed path be checked at a tight tolerance."""
    (ln0_g, ln0_b,
     w1, b1, ln1_g, ln1_b,
     w2, b2, ln2_g, ln2_b,
     w3, b3, ln3_g, ln3_b,
     w4, b4, ln4_g, ln4_b,
     w5, b5, ln5_g, ln5_b,
     wo, bo) = params
    w1f = jnp.reshape(ln0_g, (-1, 1)) * w1
    b1f = b1 + _mm(jnp.reshape(ln0_b, (1, -1)), w1)

    mu = jnp.mean(x, axis=-1, keepdims=True)
    var = jnp.mean((x - mu) ** 2, axis=-1, keepdims=True)
    h = (x - mu) * jax.lax.rsqrt(var + 1e-5)
    h = jnp.maximum(_layernorm(_mm(h, w1f) + b1f, ln1_g, ln1_b), 0.0)
    h = jnp.maximum(_layernorm(_mm(h, w2) + b2, ln2_g, ln2_b), 0.0)
    h = jnp.maximum(_layernorm(_mm(h, w3) + b3, ln3_g, ln3_b), 0.0)
    h = jnp.maximum(_layernorm(_mm(h, w4) + b4, ln4_g, ln4_b), 0.0)
    h = jnp.maximum(_layernorm(_mm(h, w5) + b5, ln5_g, ln5_b), 0.0)
    return jnp.tanh(_mm(h, wo) + bo)


if __name__ == "__main__":
    state_dim, action_dim, hidden_dim = 8, 2, 32

    key = jax.random.PRNGKey(0)
    k_x, k_p, k_a, k_x2 = jax.random.split(key, 4)

    # --- check 1: module-style init, small batch (single grid step) ----------
    batch = 4
    x = jax.random.normal(k_x, (batch, state_dim), dtype=jnp.float32)
    params = _init_params(k_p, state_dim, action_dim, hidden_dim)
    slab, dims = pack_params(params, state_dim, action_dim, hidden_dim)

    fwd = jax.jit(functools.partial(triple_pendulum_actor, dims=dims))
    out = jax.block_until_ready(fwd(x, slab))
    ref = _reference(x, params)
    assert out.shape == (batch, action_dim)
    assert jnp.allclose(out, ref, atol=1e-4, rtol=1e-4), \
        "mismatch vs JAX reference (check 1)"

    # --- check 2: random affine/bias params (exercises LN0 folding + packing),
    #     large odd batch (exercises padding + even 'parallel' grid >= 2) ------
    batch2 = 1000
    x2 = jax.random.normal(k_x2, (batch2, state_dim), dtype=jnp.float32)
    params_r = _randomize_affine(params, k_a)
    slab_r, dims_r = pack_params(params_r, state_dim, action_dim, hidden_dim)

    fwd2 = jax.jit(functools.partial(triple_pendulum_actor, dims=dims_r))
    out2 = jax.block_until_ready(fwd2(x2, slab_r))
    assert out2.shape == (batch2, action_dim)
    # Tight check against the folded reference (same fp formulation as kernel).
    ref2_folded = _reference_folded(x2, params_r)
    assert jnp.allclose(out2, ref2_folded, atol=1e-4, rtol=1e-4), \
        "mismatch vs folded JAX reference (check 2a)"
    # Looser check against the un-folded (PyTorch-ordered) reference.
    ref2 = _reference(x2, params_r)
    assert jnp.allclose(out2, ref2, atol=3e-3, rtol=3e-3), \
        "mismatch vs JAX reference (check 2b)"

    print("KERNEL_OK")
</pallas_src>

<mosaic_0001>
module attributes {stable_mosaic.version = 11 : i64} {
  func.func @_actor_kernel(%arg0: i32, %arg1: memref<8x128xf32, #tpu.memory_space<vmem>>, %arg2: memref<144x768xf32, #tpu.memory_space<vmem>>, %arg3: memref<8x128xf32, #tpu.memory_space<vmem>>) attributes {dimension_semantics = [#tpu.dimension_semantics<parallel>], iteration_bounds = array<i64: 1>, scalar_prefetch = 0 : i64, scratch_operands = 0 : i64, tpu.core_type = #tpu.core_type<tc>, window_params = [{transform_indices = @transform_0, window_bounds = array<i64: 8, 128>}, {pipeline_mode = #tpu.pipeline_mode<synchronous>, transform_indices = @transform_1, window_bounds = array<i64: 144, 768>}, {transform_indices = @transform_2, window_bounds = array<i64: 8, 128>}]} {
    %c0 = arith.constant 0 : index
    %c0_0 = arith.constant 0 : index
    %0 = vector.load %arg1[%c0, %c0_0] : memref<8x128xf32, #tpu.memory_space<vmem>>, vector<8x128xf32>
    %cst = arith.constant dense<0.000000e+00> : vector<8xf32>
    %1 = vector.multi_reduction <add>, %0, %cst [1] : vector<8x128xf32> to vector<8xf32>
    %2 = vector.shape_cast %1 : vector<8xf32> to vector<8x1xf32>
    %cst_1 = arith.constant 1.250000e-01 : f32
    %3 = vector.broadcast %cst_1 : f32 to vector<8x1xf32>
    %4 = arith.mulf %2, %3 : vector<8x1xf32>
    %5 = vector.broadcast %4 : vector<8x1xf32> to vector<8x128xf32>
    %6 = arith.subf %0, %5 : vector<8x128xf32>
    %7 = tpu.iota {dimensions = array<i32: 1>} : vector<8x128xi32>
    %c8_i32 = arith.constant 8 : i32
    %8 = vector.broadcast %c8_i32 : i32 to vector<8x128xi32>
    %9 = arith.cmpi slt, %7, %8 : vector<8x128xi32>
    %cst_2 = arith.constant 0.000000e+00 : f32
    %10 = vector.broadcast %cst_2 : f32 to vector<8x128xf32>
    %11 = arith.select %9, %6, %10 : vector<8x128xi1>, vector<8x128xf32>
    %12 = arith.mulf %11, %11 : vector<8x128xf32>
    %cst_3 = arith.constant dense<0.000000e+00> : vector<8xf32>
    %13 = vector.multi_reduction <add>, %12, %cst_3 [1] : vector<8x128xf32> to vector<8xf32>
    %14 = vector.shape_cast %13 : vector<8xf32> to vector<8x1xf32>
    %cst_4 = arith.constant 1.250000e-01 : f32
    %15 = vector.broadcast %cst_4 : f32 to vector<8x1xf32>
    %16 = arith.mulf %14, %15 : vector<8x1xf32>
    %cst_5 = arith.constant 9.99999974E-6 : f32
    %17 = vector.broadcast %cst_5 : f32 to vector<8x1xf32>
    %18 = arith.addf %16, %17 : vector<8x1xf32>
    %19 = math.rsqrt %18 : vector<8x1xf32>
    %20 = vector.broadcast %19 : vector<8x1xf32> to vector<8x128xf32>
    %21 = arith.mulf %11, %20 : vector<8x128xf32>
    %c0_6 = arith.constant 0 : index
    %c0_7 = arith.constant 0 : index
    %22 = vector.load %arg2[%c0_6, %c0_7] : memref<144x768xf32, #tpu.memory_space<vmem>>, vector<128x128xf32>
    %c128 = arith.constant 128 : index
    %c0_8 = arith.constant 0 : index
    %23 = vector.load %arg2[%c128, %c0_8] : memref<144x768xf32, #tpu.memory_space<vmem>>, vector<1x128xf32>
    %c129 = arith.constant 129 : index
    %c0_9 = arith.constant 0 : index
    %24 = vector.load %arg2[%c129, %c0_9] : memref<144x768xf32, #tpu.memory_space<vmem>>, vector<1x128xf32>
    %c130 = arith.constant 130 : index
    %c0_10 = arith.constant 0 : index
    %25 = vector.load %arg2[%c130, %c0_10] : memref<144x768xf32, #tpu.memory_space<vmem>>, vector<1x128xf32>
    %cst_11 = arith.constant dense<0.000000e+00> : vector<8x128xf32>
    %26 = tpu.matmul %21, %22, %cst_11 {dimension_numbers = #tpu.dot_dimension_numbers<[1], [0], [0], [1], [0, 0, 1, 1], [], []>} : vector<8x128xf32>, vector<128x128xf32>, vector<8x128xf32> -> vector<8x128xf32>
    %27 = vector.broadcast %23 : vector<1x128xf32> to vector<8x128xf32>
    %28 = arith.addf %26, %27 : vector<8x128xf32>
    %cst_12 = arith.constant dense<0.000000e+00> : vector<8xf32>
    %29 = vector.multi_reduction <add>, %28, %cst_12 [1] : vector<8x128xf32> to vector<8xf32>
    %30 = vector.shape_cast %29 : vector<8xf32> to vector<8x1xf32>
    %cst_13 = arith.constant 3.125000e-02 : f32
    %31 = vector.broadcast %cst_13 : f32 to vector<8x1xf32>
    %32 = arith.mulf %30, %31 : vector<8x1xf32>
    %33 = vector.broadcast %32 : vector<8x1xf32> to vector<8x128xf32>
    %34 = arith.subf %28, %33 : vector<8x128xf32>
    %35 = tpu.iota {dimensions = array<i32: 1>} : vector<8x128xi32>
    %c32_i32 = arith.constant 32 : i32
    %36 = vector.broadcast %c32_i32 : i32 to vector<8x128xi32>
    %37 = arith.cmpi slt, %35, %36 : vector<8x128xi32>
    %cst_14 = arith.constant 0.000000e+00 : f32
    %38 = vector.broadcast %cst_14 : f32 to vector<8x128xf32>
    %39 = arith.select %37, %34, %38 : vector<8x128xi1>, vector<8x128xf32>
    %40 = arith.mulf %39, %39 : vector<8x128xf32>
    %cst_15 = arith.constant dense<0.000000e+00> : vector<8xf32>
    %41 = vector.multi_reduction <add>, %40, %cst_15 [1] : vector<8x128xf32> to vector<8xf32>
    %42 = vector.shape_cast %41 : vector<8xf32> to vector<8x1xf32>
    %cst_16 = arith.constant 3.125000e-02 : f32
    %43 = vector.broadcast %cst_16 : f32 to vector<8x1xf32>
    %44 = arith.mulf %42, %43 : vector<8x1xf32>
    %cst_17 = arith.constant 9.99999974E-6 : f32
    %45 = vector.broadcast %cst_17 : f32 to vector<8x1xf32>
    %46 = arith.addf %44, %45 : vector<8x1xf32>
    %47 = math.rsqrt %46 : vector<8x1xf32>
    %48 = vector.broadcast %47 : vector<8x1xf32> to vector<8x128xf32>
    %49 = arith.mulf %39, %48 : vector<8x128xf32>
    %50 = vector.broadcast %24 : vector<1x128xf32> to vector<8x128xf32>
    %51 = arith.mulf %49, %50 : vector<8x128xf32>
    %52 = vector.broadcast %25 : vector<1x128xf32> to vector<8x128xf32>
    %53 = arith.addf %51, %52 : vector<8x128xf32>
    %cst_18 = arith.constant 0.000000e+00 : f32
    %54 = vector.broadcast %cst_18 : f32 to vector<8x128xf32>
    %55 = arith.maximumf %53, %54 : vector<8x128xf32>
    %c0_19 = arith.constant 0 : index
    %c128_20 = arith.constant 128 : index
    %56 = vector.load %arg2[%c0_19, %c128_20] : memref<144x768xf32, #tpu.memory_space<vmem>>, vector<128x128xf32>
    %c131 = arith.constant 131 : index
    %c0_21 = arith.constant 0 : index
    %57 = vector.load %arg2[%c131, %c0_21] : memref<144x768xf32, #tpu.memory_space<vmem>>, vector<1x128xf32>
    %c132 = arith.constant 132 : index
    %c0_22 = arith.constant 0 : index
    %58 = vector.load %arg2[%c132, %c0_22] : memref<144x768xf32, #tpu.memory_space<vmem>>, vector<1x128xf32>
    %c133 = arith.constant 133 : index
    %c0_23 = arith.constant 0 : index
    %59 = vector.load %arg2[%c133, %c0_23] : memref<144x768xf32, #tpu.memory_space<vmem>>, vector<1x128xf32>
    %cst_24 = arith.constant dense<0.000000e+00> : vector<8x128xf32>
    %60 = tpu.matmul %55, %56, %cst_24 {dimension_numbers = #tpu.dot_dimension_numbers<[1], [0], [0], [1], [0, 0, 1, 1], [], []>} : vector<8x128xf32>, vector<128x128xf32>, vector<8x128xf32> -> vector<8x128xf32>
    %61 = vector.broadcast %57 : vector<1x128xf32> to vector<8x128xf32>
    %62 = arith.addf %60, %61 : vector<8x128xf32>
    %cst_25 = arith.constant dense<0.000000e+00> : vector<8xf32>
    %63 = vector.multi_reduction <add>, %62, %cst_25 [1] : vector<8x128xf32> to vector<8xf32>
    %64 = vector.shape_cast %63 : vector<8xf32> to vector<8x1xf32>
    %cst_26 = arith.constant 3.125000e-02 : f32
    %65 = vector.broadcast %cst_26 : f32 to vector<8x1xf32>
    %66 = arith.mulf %64, %65 : vector<8x1xf32>
    %67 = vector.broadcast %66 : vector<8x1xf32> to vector<8x128xf32>
    %68 = arith.subf %62, %67 : vector<8x128xf32>
    %69 = tpu.iota {dimensions = array<i32: 1>} : vector<8x128xi32>
    %c32_i32_27 = arith.constant 32 : i32
    %70 = vector.broadcast %c32_i32_27 : i32 to vector<8x128xi32>
    %71 = arith.cmpi slt, %69, %70 : vector<8x128xi32>
    %cst_28 = arith.constant 0.000000e+00 : f32
    %72 = vector.broadcast %cst_28 : f32 to vector<8x128xf32>
    %73 = arith.select %71, %68, %72 : vector<8x128xi1>, vector<8x128xf32>
    %74 = arith.mulf %73, %73 : vector<8x128xf32>
    %cst_29 = arith.constant dense<0.000000e+00> : vector<8xf32>
    %75 = vector.multi_reduction <add>, %74, %cst_29 [1] : vector<8x128xf32> to vector<8xf32>
    %76 = vector.shape_cast %75 : vector<8xf32> to vector<8x1xf32>
    %cst_30 = arith.constant 3.125000e-02 : f32
    %77 = vector.broadcast %cst_30 : f32 to vector<8x1xf32>
    %78 = arith.mulf %76, %77 : vector<8x1xf32>
    %cst_31 = arith.constant 9.99999974E-6 : f32
    %79 = vector.broadcast %cst_31 : f32 to vector<8x1xf32>
    %80 = arith.addf %78, %79 : vector<8x1xf32>
    %81 = math.rsqrt %80 : vector<8x1xf32>
    %82 = vector.broadcast %81 : vector<8x1xf32> to vector<8x128xf32>
    %83 = arith.mulf %73, %82 : vector<8x128xf32>
    %84 = vector.broadcast %58 : vector<1x128xf32> to vector<8x128xf32>
    %85 = arith.mulf %83, %84 : vector<8x128xf32>
    %86 = vector.broadcast %59 : vector<1x128xf32> to vector<8x128xf32>
    %87 = arith.addf %85, %86 : vector<8x128xf32>
    %cst_32 = arith.constant 0.000000e+00 : f32
    %88 = vector.broadcast %cst_32 : f32 to vector<8x128xf32>
    %89 = arith.maximumf %87, %88 : vector<8x128xf32>
    %c0_33 = arith.constant 0 : index
    %c256 = arith.constant 256 : index
    %90 = vector.load %arg2[%c0_33, %c256] : memref<144x768xf32, #tpu.memory_space<vmem>>, vector<128x128xf32>
    %c134 = arith.constant 134 : index
    %c0_34 = arith.constant 0 : index
    %91 = vector.load %arg2[%c134, %c0_34] : memref<144x768xf32, #tpu.memory_space<vmem>>, vector<1x128xf32>
    %c135 = arith.constant 135 : index
    %c0_35 = arith.constant 0 : index
    %92 = vector.load %arg2[%c135, %c0_35] : memref<144x768xf32, #tpu.memory_space<vmem>>, vector<1x128xf32>
    %c136 = arith.constant 136 : index
    %c0_36 = arith.constant 0 : index
    %93 = vector.load %arg2[%c136, %c0_36] : memref<144x768xf32, #tpu.memory_space<vmem>>, vector<1x128xf32>
    %cst_37 = arith.constant dense<0.000000e+00> : vector<8x128xf32>
    %94 = tpu.matmul %89, %90, %cst_37 {dimension_numbers = #tpu.dot_dimension_numbers<[1], [0], [0], [1], [0, 0, 1, 1], [], []>} : vector<8x128xf32>, vector<128x128xf32>, vector<8x128xf32> -> vector<8x128xf32>
    %95 = vector.broadcast %91 : vector<1x128xf32> to vector<8x128xf32>
    %96 = arith.addf %94, %95 : vector<8x128xf32>
    %cst_38 = arith.constant dense<0.000000e+00> : vector<8xf32>
    %97 = vector.multi_reduction <add>, %96, %cst_38 [1] : vector<8x128xf32> to vector<8xf32>
    %98 = vector.shape_cast %97 : vector<8xf32> to vector<8x1xf32>
    %cst_39 = arith.constant 3.125000e-02 : f32
    %99 = vector.broadcast %cst_39 : f32 to vector<8x1xf32>
    %100 = arith.mulf %98, %99 : vector<8x1xf32>
    %101 = vector.broadcast %100 : vector<8x1xf32> to vector<8x128xf32>
    %102 = arith.subf %96, %101 : vector<8x128xf32>
    %103 = tpu.iota {dimensions = array<i32: 1>} : vector<8x128xi32>
    %c32_i32_40 = arith.constant 32 : i32
    %104 = vector.broadcast %c32_i32_40 : i32 to vector<8x128xi32>
    %105 = arith.cmpi slt, %103, %104 : vector<8x128xi32>
    %cst_41 = arith.constant 0.000000e+00 : f32
    %106 = vector.broadcast %cst_41 : f32 to vector<8x128xf32>
    %107 = arith.select %105, %102, %106 : vector<8x128xi1>, vector<8x128xf32>
    %108 = arith.mulf %107, %107 : vector<8x128xf32>
    %cst_42 = arith.constant dense<0.000000e+00> : vector<8xf32>
    %109 = vector.multi_reduction <add>, %108, %cst_42 [1] : vector<8x128xf32> to vector<8xf32>
    %110 = vector.shape_cast %109 : vector<8xf32> to vector<8x1xf32>
    %cst_43 = arith.constant 3.125000e-02 : f32
    %111 = vector.broadcast %cst_43 : f32 to vector<8x1xf32>
    %112 = arith.mulf %110, %111 : vector<8x1xf32>
    %cst_44 = arith.constant 9.99999974E-6 : f32
    %113 = vector.broadcast %cst_44 : f32 to vector<8x1xf32>
    %114 = arith.addf %112, %113 : vector<8x1xf32>
    %115 = math.rsqrt %114 : vector<8x1xf32>
    %116 = vector.broadcast %115 : vector<8x1xf32> to vector<8x128xf32>
    %117 = arith.mulf %107, %116 : vector<8x128xf32>
    %118 = vector.broadcast %92 : vector<1x128xf32> to vector<8x128xf32>
    %119 = arith.mulf %117, %118 : vector<8x128xf32>
    %120 = vector.broadcast %93 : vector<1x128xf32> to vector<8x128xf32>
    %121 = arith.addf %119, %120 : vector<8x128xf32>
    %cst_45 = arith.constant 0.000000e+00 : f32
    %122 = vector.broadcast %cst_45 : f32 to vector<8x128xf32>
    %123 = arith.maximumf %121, %122 : vector<8x128xf32>
    %c0_46 = arith.constant 0 : index
    %c384 = arith.constant 384 : index
    %124 = vector.load %arg2[%c0_46, %c384] : memref<144x768xf32, #tpu.memory_space<vmem>>, vector<128x128xf32>
    %c137 = arith.constant 137 : index
    %c0_47 = arith.constant 0 : index
    %125 = vector.load %arg2[%c137, %c0_47] : memref<144x768xf32, #tpu.memory_space<vmem>>, vector<1x128xf32>
    %c138 = arith.constant 138 : index
    %c0_48 = arith.constant 0 : index
    %126 = vector.load %arg2[%c138, %c0_48] : memref<144x768xf32, #tpu.memory_space<vmem>>, vector<1x128xf32>
    %c139 = arith.constant 139 : index
    %c0_49 = arith.constant 0 : index
    %127 = vector.load %arg2[%c139, %c0_49] : memref<144x768xf32, #tpu.memory_space<vmem>>, vector<1x128xf32>
    %cst_50 = arith.constant dense<0.000000e+00> : vector<8x128xf32>
    %128 = tpu.matmul %123, %124, %cst_50 {dimension_numbers = #tpu.dot_dimension_numbers<[1], [0], [0], [1], [0, 0, 1, 1], [], []>} : vector<8x128xf32>, vector<128x128xf32>, vector<8x128xf32> -> vector<8x128xf32>
    %129 = vector.broadcast %125 : vector<1x128xf32> to vector<8x128xf32>
    %130 = arith.addf %128, %129 : vector<8x128xf32>
    %cst_51 = arith.constant dense<0.000000e+00> : vector<8xf32>
    %131 = vector.multi_reduction <add>, %130, %cst_51 [1] : vector<8x128xf32> to vector<8xf32>
    %132 = vector.shape_cast %131 : vector<8xf32> to vector<8x1xf32>
    %cst_52 = arith.constant 6.250000e-02 : f32
    %133 = vector.broadcast %cst_52 : f32 to vector<8x1xf32>
    %134 = arith.mulf %132, %133 : vector<8x1xf32>
    %135 = vector.broadcast %134 : vector<8x1xf32> to vector<8x128xf32>
    %136 = arith.subf %130, %135 : vector<8x128xf32>
    %137 = tpu.iota {dimensions = array<i32: 1>} : vector<8x128xi32>
    %c16_i32 = arith.constant 16 : i32
    %138 = vector.broadcast %c16_i32 : i32 to vector<8x128xi32>
    %139 = arith.cmpi slt, %137, %138 : vector<8x128xi32>
    %cst_53 = arith.constant 0.000000e+00 : f32
    %140 = vector.broadcast %cst_53 : f32 to vector<8x128xf32>
    %141 = arith.select %139, %136, %140 : vector<8x128xi1>, vector<8x128xf32>
    %142 = arith.mulf %141, %141 : vector<8x128xf32>
    %cst_54 = arith.constant dense<0.000000e+00> : vector<8xf32>
    %143 = vector.multi_reduction <add>, %142, %cst_54 [1] : vector<8x128xf32> to vector<8xf32>
    %144 = vector.shape_cast %143 : vector<8xf32> to vector<8x1xf32>
    %cst_55 = arith.constant 6.250000e-02 : f32
    %145 = vector.broadcast %cst_55 : f32 to vector<8x1xf32>
    %146 = arith.mulf %144, %145 : vector<8x1xf32>
    %cst_56 = arith.constant 9.99999974E-6 : f32
    %147 = vector.broadcast %cst_56 : f32 to vector<8x1xf32>
    %148 = arith.addf %146, %147 : vector<8x1xf32>
    %149 = math.rsqrt %148 : vector<8x1xf32>
    %150 = vector.broadcast %149 : vector<8x1xf32> to vector<8x128xf32>
    %151 = arith.mulf %141, %150 : vector<8x128xf32>
    %152 = vector.broadcast %126 : vector<1x128xf32> to vector<8x128xf32>
    %153 = arith.mulf %151, %152 : vector<8x128xf32>
    %154 = vector.broadcast %127 : vector<1x128xf32> to vector<8x128xf32>
    %155 = arith.addf %153, %154 : vector<8x128xf32>
    %cst_57 = arith.constant 0.000000e+00 : f32
    %156 = vector.broadcast %cst_57 : f32 to vector<8x128xf32>
    %157 = arith.maximumf %155, %156 : vector<8x128xf32>
    %c0_58 = arith.constant 0 : index
    %c512 = arith.constant 512 : index
    %158 = vector.load %arg2[%c0_58, %c512] : memref<144x768xf32, #tpu.memory_space<vmem>>, vector<128x128xf32>
    %c140 = arith.constant 140 : index
    %c0_59 = arith.constant 0 : index
    %159 = vector.load %arg2[%c140, %c0_59] : memref<144x768xf32, #tpu.memory_space<vmem>>, vector<1x128xf32>
    %c141 = arith.constant 141 : index
    %c0_60 = arith.constant 0 : index
    %160 = vector.load %arg2[%c141, %c0_60] : memref<144x768xf32, #tpu.memory_space<vmem>>, vector<1x128xf32>
    %c142 = arith.constant 142 : index
    %c0_61 = arith.constant 0 : index
    %161 = vector.load %arg2[%c142, %c0_61] : memref<144x768xf32, #tpu.memory_space<vmem>>, vector<1x128xf32>
    %cst_62 = arith.constant dense<0.000000e+00> : vector<8x128xf32>
    %162 = tpu.matmul %157, %158, %cst_62 {dimension_numbers = #tpu.dot_dimension_numbers<[1], [0], [0], [1], [0, 0, 1, 1], [], []>} : vector<8x128xf32>, vector<128x128xf32>, vector<8x128xf32> -> vector<8x128xf32>
    %163 = vector.broadcast %159 : vector<1x128xf32> to vector<8x128xf32>
    %164 = arith.addf %162, %163 : vector<8x128xf32>
    %cst_63 = arith.constant dense<0.000000e+00> : vector<8xf32>
    %165 = vector.multi_reduction <add>, %164, %cst_63 [1] : vector<8x128xf32> to vector<8xf32>
    %166 = vector.shape_cast %165 : vector<8xf32> to vector<8x1xf32>
    %cst_64 = arith.constant 1.250000e-01 : f32
    %167 = vector.broadcast %cst_64 : f32 to vector<8x1xf32>
    %168 = arith.mulf %166, %167 : vector<8x1xf32>
    %169 = vector.broadcast %168 : vector<8x1xf32> to vector<8x128xf32>
    %170 = arith.subf %164, %169 : vector<8x128xf32>
    %171 = tpu.iota {dimensions = array<i32: 1>} : vector<8x128xi32>
    %c8_i32_65 = arith.constant 8 : i32
    %172 = vector.broadcast %c8_i32_65 : i32 to vector<8x128xi32>
    %173 = arith.cmpi slt, %171, %172 : vector<8x128xi32>
    %cst_66 = arith.constant 0.000000e+00 : f32
    %174 = vector.broadcast %cst_66 : f32 to vector<8x128xf32>
    %175 = arith.select %173, %170, %174 : vector<8x128xi1>, vector<8x128xf32>
    %176 = arith.mulf %175, %175 : vector<8x128xf32>
    %cst_67 = arith.constant dense<0.000000e+00> : vector<8xf32>
    %177 = vector.multi_reduction <add>, %176, %cst_67 [1] : vector<8x128xf32> to vector<8xf32>
    %178 = vector.shape_cast %177 : vector<8xf32> to vector<8x1xf32>
    %cst_68 = arith.constant 1.250000e-01 : f32
    %179 = vector.broadcast %cst_68 : f32 to vector<8x1xf32>
    %180 = arith.mulf %178, %179 : vector<8x1xf32>
    %cst_69 = arith.constant 9.99999974E-6 : f32
    %181 = vector.broadcast %cst_69 : f32 to vector<8x1xf32>
    %182 = arith.addf %180, %181 : vector<8x1xf32>
    %183 = math.rsqrt %182 : vector<8x1xf32>
    %184 = vector.broadcast %183 : vector<8x1xf32> to vector<8x128xf32>
    %185 = arith.mulf %175, %184 : vector<8x128xf32>
    %186 = vector.broadcast %160 : vector<1x128xf32> to vector<8x128xf32>
    %187 = arith.mulf %185, %186 : vector<8x128xf32>
    %188 = vector.broadcast %161 : vector<1x128xf32> to vector<8x128xf32>
    %189 = arith.addf %187, %188 : vector<8x128xf32>
    %cst_70 = arith.constant 0.000000e+00 : f32
    %190 = vector.broadcast %cst_70 : f32 to vector<8x128xf32>
    %191 = arith.maximumf %189, %190 : vector<8x128xf32>
    %c0_71 = arith.constant 0 : index
    %c640 = arith.constant 640 : index
    %192 = vector.load %arg2[%c0_71, %c640] : memref<144x768xf32, #tpu.memory_space<vmem>>, vector<128x128xf32>
    %c143 = arith.constant 143 : index
    %c0_72 = arith.constant 0 : index
    %193 = vector.load %arg2[%c143, %c0_72] : memref<144x768xf32, #tpu.memory_space<vmem>>, vector<1x128xf32>
    %cst_73 = arith.constant dense<0.000000e+00> : vector<8x128xf32>
    %194 = tpu.matmul %191, %192, %cst_73 {dimension_numbers = #tpu.dot_dimension_numbers<[1], [0], [0], [1], [0, 0, 1, 1], [], []>} : vector<8x128xf32>, vector<128x128xf32>, vector<8x128xf32> -> vector<8x128xf32>
    %195 = vector.broadcast %193 : vector<1x128xf32> to vector<8x128xf32>
    %196 = arith.addf %194, %195 : vector<8x128xf32>
    %197 = math.tanh %196 : vector<8x128xf32>
    %c0_74 = arith.constant 0 : index
    %c0_75 = arith.constant 0 : index
    %198 = vector.load %arg3[%c0_74, %c0_75] : memref<8x128xf32, #tpu.memory_space<vmem>>, vector<8x128xf32>
    tpu.vector_store %arg3[%c0_74, %c0_75], %197 {strides = array<i32>} : memref<8x128xf32, #tpu.memory_space<vmem>>, vector<8x128xf32>,
    return
  }
  func.func @transform_0(%arg0: i32) -> (i32, i32) {
    %c0_i32 = arith.constant 0 : i32
    %c0_i32_0 = arith.constant 0 : i32
    return %arg0, %c0_i32 : i32, i32
  }
  func.func @transform_1(%arg0: i32) -> (i32, i32) {
    %c0_i32 = arith.constant 0 : i32
    %c0_i32_0 = arith.constant 0 : i32
    %c0_i32_1 = arith.constant 0 : i32
    return %c0_i32, %c0_i32_0 : i32, i32
  }
  func.func @transform_2(%arg0: i32) -> (i32, i32) {
    %c0_i32 = arith.constant 0 : i32
    %c0_i32_0 = arith.constant 0 : i32
    return %arg0, %c0_i32 : i32, i32
  }
}

</mosaic_0001>

<llo_original>
// kernel: triple_pendulum_actor.1
$region0: #{triple_pendulum_actor.1}
  #allocation0 [shape = 'u32[]', space=smem, size = 0x4, offset = 0x4, fixed_abs, tag = 'smem constant byte address 0x4 - core index']
  #allocation1 [shape = 'u32[144,128]{1,0:T(1,128)}', space=vmem, size = 0x12000, scoped, tag = 'internal scratch']
  %s0 = inlined_call_operand.vmem [shape: f32[8,128], index: 0, kind: input, shape index: {}]
  %s1 = inlined_call_operand.hbm [shape: f32[144,768], index: 1, kind: input, shape index: {}]
  %s2 = inlined_call_operand.vmem [shape: f32[8,128], index: 2, kind: output, shape index: {}]
  %s3 = sld [smem:[#allocation0]]
  $region22: #{triple_pendulum_actor.1} parent=0
    _
  %s5 = ssub.s32 1, %s3
  %s6 = scalar_select 0, %s5, %s3
  $region1: #{triple_pendulum_actor.1} parent=0
    #allocation2 [shape = 'u8[442368]{0}', space=vmem, size = 0x6c000, scoped, tag = 'input window, operand 1, single buffered']
    #allocation3 [shape = 's32[1]{0}', space=sflag, size = 0x4, scoped, tag = 'scoped memory for triple_pendulum_actor.1']
    %7 = vsyncpa [#allocation3], 0
    // Predicated region
    $region2: #{triple_pendulum_actor.1} parent=1 // pred_check
      _
    $region3: #{triple_pendulum_actor.1} parent=1 // pred_check_branch
      %9 = sbr.rel (0) target = $region5
    $region4: #{triple_pendulum_actor.1} parent=1 // pred_region
      _
    $region5: #{triple_pendulum_actor.1} parent=1 // pred_fallthru
      _
    // Predicated region
    $region6: #{triple_pendulum_actor.1} parent=1 // pred_check
      _
    $region7: #{triple_pendulum_actor.1} parent=1 // pred_check_branch
      %11 = sbr.rel (0) target = $region9
    $region8: #{triple_pendulum_actor.1} parent=1 // pred_region
      %s13 = ssub.s32 13824, 13824
      %14 = vsyncadd [#allocation3], %s13
      %s15 = sshll.u32 [#allocation2], 4
      %s16 = int_to_ptr.vmem [resolvable:$true] %s15
      %21 = dma.hbm_to_vmem [thread:$0]  %s1, 13824, %s16, [#allocation3], 768, 768, 48
    $region9: #{triple_pendulum_actor.1} parent=1 // pred_fallthru
      _
    // Predicated region
    $region10: #{triple_pendulum_actor.1} parent=1 // pred_check
      _
    $region11: #{triple_pendulum_actor.1} parent=1 // pred_check_branch
      %23 = sbr.rel (0) target = $region13
    $region12: #{triple_pendulum_actor.1} parent=1 // pred_region
      %24 = dma.done [#allocation3], 13824
    $region13: #{triple_pendulum_actor.1} parent=1 // pred_fallthru
      _
    %v25 = vld [vmem:[%s0] sm:$0xff]
    %26 = vadd.xlane.f32.xlu0 %v25
    %v27 = vpop.xlane.xlu0 %26
    %v28 = vmul.f32 %v27, 0.125
    %v29 = vsub.f32 %v25, %v28
    %v30 = vlaneseq
    %v31 = vand.u32 %v30, 127
    %vm32 = vcmp.lt.s32.totalorder %v31, 8
    %v33 = vsel %vm32, %v29, 0.0
    %v34 = vmul.f32 %v33, %v33
    %35 = vadd.xlane.f32.xlu0 %v34
    %v36 = vpop.xlane.xlu0 %35
    %v37 = vmul.f32 %v36, 0.125
    %v38 = vadd.f32 %v37, 1e-05
    %v39 = vrsqrt.pop %v38
    %v40 = vmul.f32 %v33, %v39
    %v41 = vld [vmem:[#allocation2] sm:$0xff]
    %v42 = vld [vmem:[#allocation2 + $0x30] sm:$0xff]
    %v43 = vld [vmem:[#allocation2 + $0x60] sm:$0xff]
    %v44 = vld [vmem:[#allocation2 + $0x90] sm:$0xff]
    %v45 = vld [vmem:[#allocation2 + $0xc0] sm:$0xff]
    %v46 = vld [vmem:[#allocation2 + $0xf0] sm:$0xff]
    %v47 = vld [vmem:[#allocation2 + $0x120] sm:$0xff]
    %v48 = vld [vmem:[#allocation2 + $0x150] sm:$0xff]
    %v49 = vld [vmem:[#allocation2 + $0x180] sm:$0xff]
    %v50 = vld [vmem:[#allocation2 + $0x1b0] sm:$0xff]
    %v51 = vld [vmem:[#allocation2 + $0x1e0] sm:$0xff]
    %v52 = vld [vmem:[#allocation2 + $0x210] sm:$0xff]
    %v53 = vld [vmem:[#allocation2 + $0x240] sm:$0xff]
    %v54 = vld [vmem:[#allocation2 + $0x270] sm:$0xff]
    %v55 = vld [vmem:[#allocation2 + $0x2a0] sm:$0xff]
    %v56 = vld [vmem:[#allocation2 + $0x2d0] sm:$0xff]
    %v57 = vld [vmem:[#allocation2 + $0x300] ss:$0 sm:$0xff]
    %v58 = vld [vmem:[#allocation2 + $0x301] ss:$0 sm:$0xff]
    %v59 = vld [vmem:[#allocation2 + $0x302] ss:$0 sm:$0xff]
    %60 = vmatprep.subr.mxu0 0.0
    %61 = vmatpush1.msra.mxu0 %v56
    %62 = vmatprep.subr.mxu0 0.0
    %63 = vmatpush1.msra.mxu0 %v55
    %64 = vmatprep.subr.mxu0 0.0
    %65 = vmatpush1.msra.mxu0 %v54
    %66 = vmatprep.subr.mxu0 0.0
    %67 = vmatpush1.msra.mxu0 %v53
    %68 = vmatprep.subr.mxu0 0.0
    %69 = vmatpush1.msra.mxu0 %v52
    %70 = vmatprep.subr.mxu0 0.0
    %71 = vmatpush1.msra.mxu0 %v51
    %72 = vmatprep.subr.mxu0 0.0
    %73 = vmatpush1.msra.mxu0 %v50
    %74 = vmatprep.subr.mxu0 0.0
    %75 = vmatpush1.msra.mxu0 %v49
    %76 = vmatprep.subr.mxu0 0.0
    %77 = vmatpush1.msra.mxu0 %v48
    %78 = vmatprep.subr.mxu0 0.0
    %79 = vmatpush1.msra.mxu0 %v47
    %80 = vmatprep.subr.mxu0 0.0
    %81 = vmatpush1.msra.mxu0 %v46
    %82 = vmatprep.subr.mxu0 0.0
    %83 = vmatpush1.msra.mxu0 %v45
    %84 = vmatprep.subr.mxu0 0.0
    %85 = vmatpush1.msra.mxu0 %v44
    %86 = vmatprep.subr.mxu0 0.0
    %87 = vmatpush1.msra.mxu0 %v43
    %88 = vmatprep.subr.mxu0 0.0
    %89 = vmatpush1.msra.mxu0 %v42
    %90 = vmatprep.subr.mxu0 0.0
    %91 = vmatpush1.msra.mxu0 %v41
    %92 = vmatprep.subr.mxu0 0.0
    %93 = vmatpush2.msra.mxu0 0.0
    %94 = vmatprep.subr.mxu0 0.0
    %95 = vmatpush2.msra.mxu0 0.0
    %96 = vmatprep.subr.mxu0 0.0
    %97 = vmatpush2.msra.mxu0 0.0
    %98 = vmatprep.subr.mxu0 0.0
    %99 = vmatpush2.msra.mxu0 0.0
    %100 = vmatprep.subr.mxu0 0.0
    %101 = vmatpush2.msra.mxu0 0.0
    %102 = vmatprep.subr.mxu0 0.0
    %103 = vmatpush2.msra.mxu0 0.0
    %104 = vmatprep.subr.mxu0 0.0
    %105 = vmatpush2.msra.mxu0 0.0
    %106 = vmatprep.subr.mxu0 0.0
    %107 = vmatpush2.msra.mxu0 0.0
    %108 = vmatprep.subr.mxu0 0.0
    %109 = vmatpush2.msra.mxu0 0.0
    %110 = vmatprep.subr.mxu0 0.0
    %111 = vmatpush2.msra.mxu0 0.0
    %112 = vmatprep.subr.mxu0 0.0
    %113 = vmatpush2.msra.mxu0 0.0
    %114 = vmatprep.subr.mxu0 0.0
    %115 = vmatpush2.msra.mxu0 0.0
    %116 = vmatprep.subr.mxu0 0.0
    %117 = vmatpush2.msra.mxu0 0.0
    %118 = vmatprep.subr.mxu0 0.0
    %119 = vmatpush2.msra.mxu0 0.0
    %120 = vmatprep.subr.mxu0 0.0
    %121 = vmatpush2.msra.mxu0 0.0
    %122 = vmatprep.subr.mxu0 0.0
    %123 = vmatpush2.msra.mxu0 0.0
    %124 = vmatprep.mubr.f32.mxu0 0.0
    %125 = vmatmul.mubr.f32.gmra.mxu0 %v40
    %v126 = vpop.f32.mrf.mxu0
    %v127 = vadd.f32 %v57, %v126
    %v128 = vpop.f32.mrf.mxu0
    %129 = vdwg.mxu0
    %130 = vadd.xlane.f32.xlu0 %v127
    %v131 = vpop.xlane.xlu0 %130
    %v132 = vmul.f32 %v131, 0.03125
    %v133 = vsub.f32 %v127, %v132
    %vm134 = vcmp.lt.s32.totalorder %v31, 32
    %v135 = vsel %vm134, %v133, 0.0
    %v136 = vmul.f32 %v135, %v135
    %137 = vadd.xlane.f32.xlu0 %v136
    %v138 = vpop.xlane.xlu0 %137
    %v139 = vmul.f32 %v138, 0.03125
    %v140 = vadd.f32 %v139, 1e-05
    %v141 = vrsqrt.pop %v140
    %v142 = vmul.f32 %v135, %v141
    %v143 = vmul.f32 %v142, %v58
    %v144 = vadd.f32 %v143, %v59
    %v145 = vmax.f32 %v144, 0.0
    %v146 = vld [vmem:[#allocation2 + $0x8] sm:$0xff]
    %v147 = vld [vmem:[#allocation2 + $0x38] sm:$0xff]
    %v148 = vld [vmem:[#allocation2 + $0x68] sm:$0xff]
    %v149 = vld [vmem:[#allocation2 + $0x98] sm:$0xff]
    %v150 = vld [vmem:[#allocation2 + $0xc8] sm:$0xff]
    %v151 = vld [vmem:[#allocation2 + $0xf8] sm:$0xff]
    %v152 = vld [vmem:[#allocation2 + $0x128] sm:$0xff]
    %v153 = vld [vmem:[#allocation2 + $0x158] sm:$0xff]
    %v154 = vld [vmem:[#allocation2 + $0x188] sm:$0xff]
    %v155 = vld [vmem:[#allocation2 + $0x1b8] sm:$0xff]
    %v156 = vld [vmem:[#allocation2 + $0x1e8] sm:$0xff]
    %v157 = vld [vmem:[#allocation2 + $0x218] sm:$0xff]
    %v158 = vld [vmem:[#allocation2 + $0x248] sm:$0xff]
    %v159 = vld [vmem:[#allocation2 + $0x278] sm:$0xff]
    %v160 = vld [vmem:[#allocation2 + $0x2a8] sm:$0xff]
    %v161 = vld [vmem:[#allocation2 + $0x2d8] sm:$0xff]
    %v162 = vld [vmem:[#allocation2 + $0x303] ss:$0 sm:$0xff]
    %v163 = vld [vmem:[#allocation2 + $0x304] ss:$0 sm:$0xff]
    %v164 = vld [vmem:[#allocation2 + $0x305] ss:$0 sm:$0xff]
    %165 = vmatprep.subr.mxu0 0.0
    %166 = vmatpush1.msra.mxu0 %v161
    %167 = vmatprep.subr.mxu0 0.0
    %168 = vmatpush1.msra.mxu0 %v160
    %169 = vmatprep.subr.mxu0 0.0
    %170 = vmatpush1.msra.mxu0 %v159
    %171 = vmatprep.subr.mxu0 0.0
    %172 = vmatpush1.msra.mxu0 %v158
    %173 = vmatprep.subr.mxu0 0.0
    %174 = vmatpush1.msra.mxu0 %v157
    %175 = vmatprep.subr.mxu0 0.0
    %176 = vmatpush1.msra.mxu0 %v156
    %177 = vmatprep.subr.mxu0 0.0
    %178 = vmatpush1.msra.mxu0 %v155
    %179 = vmatprep.subr.mxu0 0.0
    %180 = vmatpush1.msra.mxu0 %v154
    %181 = vmatprep.subr.mxu0 0.0
    %182 = vmatpush1.msra.mxu0 %v153
    %183 = vmatprep.subr.mxu0 0.0
    %184 = vmatpush1.msra.mxu0 %v152
    %185 = vmatprep.subr.mxu0 0.0
    %186 = vmatpush1.msra.mxu0 %v151
    %187 = vmatprep.subr.mxu0 0.0
    %188 = vmatpush1.msra.mxu0 %v150
    %189 = vmatprep.subr.mxu0 0.0
    %190 = vmatpush1.msra.mxu0 %v149
    %191 = vmatprep.subr.mxu0 0.0
    %192 = vmatpush1.msra.mxu0 %v148
    %193 = vmatprep.subr.mxu0 0.0
    %194 = vmatpush1.msra.mxu0 %v147
    %195 = vmatprep.subr.mxu0 0.0
    %196 = vmatpush1.msra.mxu0 %v146
    %197 = vmatprep.subr.mxu0 0.0
    %198 = vmatpush2.msra.mxu0 0.0
    %199 = vmatprep.subr.mxu0 0.0
    %200 = vmatpush2.msra.mxu0 0.0
    %201 = vmatprep.subr.mxu0 0.0
    %202 = vmatpush2.msra.mxu0 0.0
    %203 = vmatprep.subr.mxu0 0.0
    %204 = vmatpush2.msra.mxu0 0.0
    %205 = vmatprep.subr.mxu0 0.0
    %206 = vmatpush2.msra.mxu0 0.0
    %207 = vmatprep.subr.mxu0 0.0
    %208 = vmatpush2.msra.mxu0 0.0
    %209 = vmatprep.subr.mxu0 0.0
    %210 = vmatpush2.msra.mxu0 0.0
    %211 = vmatprep.subr.mxu0 0.0
    %212 = vmatpush2.msra.mxu0 0.0
    %213 = vmatprep.subr.mxu0 0.0
    %214 = vmatpush2.msra.mxu0 0.0
    %215 = vmatprep.subr.mxu0 0.0
    %216 = vmatpush2.msra.mxu0 0.0
    %217 = vmatprep.subr.mxu0 0.0
    %218 = vmatpush2.msra.mxu0 0.0
    %219 = vmatprep.subr.mxu0 0.0
    %220 = vmatpush2.msra.mxu0 0.0
    %221 = vmatprep.subr.mxu0 0.0
    %222 = vmatpush2.msra.mxu0 0.0
    %223 = vmatprep.subr.mxu0 0.0
    %224 = vmatpush2.msra.mxu0 0.0
    %225 = vmatprep.subr.mxu0 0.0
    %226 = vmatpush2.msra.mxu0 0.0
    %227 = vmatprep.subr.mxu0 0.0
    %228 = vmatpush2.msra.mxu0 0.0
    %229 = vmatprep.mubr.f32.mxu0 0.0
    %230 = vmatmul.mubr.f32.gmra.mxu0 %v145
    %v231 = vpop.f32.mrf.mxu0
    %v232 = vadd.f32 %v162, %v231
    %v233 = vpop.f32.mrf.mxu0
    %234 = vdwg.mxu0
    %235 = vadd.xlane.f32.xlu0 %v232
    %v236 = vpop.xlane.xlu0 %235
    %v237 = vmul.f32 %v236, 0.03125
    %v238 = vsub.f32 %v232, %v237
    %v239 = vsel %vm134, %v238, 0.0
    %v240 = vmul.f32 %v239, %v239
    %241 = vadd.xlane.f32.xlu0 %v240
    %v242 = vpop.xlane.xlu0 %241
    %v243 = vmul.f32 %v242, 0.03125
    %v244 = vadd.f32 %v243, 1e-05
    %v245 = vrsqrt.pop %v244
    %v246 = vmul.f32 %v239, %v245
    %v247 = vmul.f32 %v246, %v163
    %v248 = vadd.f32 %v247, %v164
    %v249 = vmax.f32 %v248, 0.0
    %v250 = vld [vmem:[#allocation2 + $0x10] sm:$0xff]
    %v251 = vld [vmem:[#allocation2 + $0x40] sm:$0xff]
    %v252 = vld [vmem:[#allocation2 + $0x70] sm:$0xff]
    %v253 = vld [vmem:[#allocation2 + $0xa0] sm:$0xff]
    %v254 = vld [vmem:[#allocation2 + $0xd0] sm:$0xff]
    %v255 = vld [vmem:[#allocation2 + $0x100] sm:$0xff]
    %v256 = vld [vmem:[#allocation2 + $0x130] sm:$0xff]
    %v257 = vld [vmem:[#allocation2 + $0x160] sm:$0xff]
    %v258 = vld [vmem:[#allocation2 + $0x190] sm:$0xff]
    %v259 = vld [vmem:[#allocation2 + $0x1c0] sm:$0xff]
    %v260 = vld [vmem:[#allocation2 + $0x1f0] sm:$0xff]
    %v261 = vld [vmem:[#allocation2 + $0x220] sm:$0xff]
    %v262 = vld [vmem:[#allocation2 + $0x250] sm:$0xff]
    %v263 = vld [vmem:[#allocation2 + $0x280] sm:$0xff]
    %v264 = vld [vmem:[#allocation2 + $0x2b0] sm:$0xff]
    %v265 = vld [vmem:[#allocation2 + $0x2e0] sm:$0xff]
    %v266 = vld [vmem:[#allocation2 + $0x306] ss:$0 sm:$0xff]
    %v267 = vld [vmem:[#allocation2 + $0x307] ss:$0 sm:$0xff]
    %v268 = vld [vmem:[#allocation2 + $0x330] ss:$0 sm:$0xff]
    %269 = vmatprep.subr.mxu0 0.0
    %270 = vmatpush1.msra.mxu0 %v265
    %271 = vmatprep.subr.mxu0 0.0
    %272 = vmatpush1.msra.mxu0 %v264
    %273 = vmatprep.subr.mxu0 0.0
    %274 = vmatpush1.msra.mxu0 %v263
    %275 = vmatprep.subr.mxu0 0.0
    %276 = vmatpush1.msra.mxu0 %v262
    %277 = vmatprep.subr.mxu0 0.0
    %278 = vmatpush1.msra.mxu0 %v261
    %279 = vmatprep.subr.mxu0 0.0
    %280 = vmatpush1.msra.mxu0 %v260
    %281 = vmatprep.subr.mxu0 0.0
    %282 = vmatpush1.msra.mxu0 %v259
    %283 = vmatprep.subr.mxu0 0.0
    %284 = vmatpush1.msra.mxu0 %v258
    %285 = vmatprep.subr.mxu0 0.0
    %286 = vmatpush1.msra.mxu0 %v257
    %287 = vmatprep.subr.mxu0 0.0
    %288 = vmatpush1.msra.mxu0 %v256
    %289 = vmatprep.subr.mxu0 0.0
    %290 = vmatpush1.msra.mxu0 %v255
    %291 = vmatprep.subr.mxu0 0.0
    %292 = vmatpush1.msra.mxu0 %v254
    %293 = vmatprep.subr.mxu0 0.0
    %294 = vmatpush1.msra.mxu0 %v253
    %295 = vmatprep.subr.mxu0 0.0
    %296 = vmatpush1.msra.mxu0 %v252
    %297 = vmatprep.subr.mxu0 0.0
    %298 = vmatpush1.msra.mxu0 %v251
    %299 = vmatprep.subr.mxu0 0.0
    %300 = vmatpush1.msra.mxu0 %v250
    %301 = vmatprep.subr.mxu0 0.0
    %302 = vmatpush2.msra.mxu0 0.0
    %303 = vmatprep.subr.mxu0 0.0
    %304 = vmatpush2.msra.mxu0 0.0
    %305 = vmatprep.subr.mxu0 0.0
    %306 = vmatpush2.msra.mxu0 0.0
    %307 = vmatprep.subr.mxu0 0.0
    %308 = vmatpush2.msra.mxu0 0.0
    %309 = vmatprep.subr.mxu0 0.0
    %310 = vmatpush2.msra.mxu0 0.0
    %311 = vmatprep.subr.mxu0 0.0
    %312 = vmatpush2.msra.mxu0 0.0
    %313 = vmatprep.subr.mxu0 0.0
    %314 = vmatpush2.msra.mxu0 0.0
    %315 = vmatprep.subr.mxu0 0.0
    %316 = vmatpush2.msra.mxu0 0.0
    %317 = vmatprep.subr.mxu0 0.0
    %318 = vmatpush2.msra.mxu0 0.0
    %319 = vmatprep.subr.mxu0 0.0
    %320 = vmatpush2.msra.mxu0 0.0
    %321 = vmatprep.subr.mxu0 0.0
    %322 = vmatpush2.msra.mxu0 0.0
    %323 = vmatprep.subr.mxu0 0.0
    %324 = vmatpush2.msra.mxu0 0.0
    %325 = vmatprep.subr.mxu0 0.0
    %326 = vmatpush2.msra.mxu0 0.0
    %327 = vmatprep.subr.mxu0 0.0
    %328 = vmatpush2.msra.mxu0 0.0
    %329 = vmatprep.subr.mxu0 0.0
    %330 = vmatpush2.msra.mxu0 0.0
    %331 = vmatprep.subr.mxu0 0.0
    %332 = vmatpush2.msra.mxu0 0.0
    %333 = vmatprep.mubr.f32.mxu0 0.0
    %334 = vmatmul.mubr.f32.gmra.mxu0 %v249
    %v335 = vpop.f32.mrf.mxu0
    %v336 = vadd.f32 %v266, %v335
    %v337 = vpop.f32.mrf.mxu0
    %338 = vdwg.mxu0
    %339 = vadd.xlane.f32.xlu0 %v336
    %v340 = vpop.xlane.xlu0 %339
    %v341 = vmul.f32 %v340, 0.03125
    %v342 = vsub.f32 %v336, %v341
    %v343 = vsel %vm134, %v342, 0.0
    %v344 = vmul.f32 %v343, %v343
    %345 = vadd.xlane.f32.xlu0 %v344
    %v346 = vpop.xlane.xlu0 %345
    %v347 = vmul.f32 %v346, 0.03125
    %v348 = vadd.f32 %v347, 1e-05
    %v349 = vrsqrt.pop %v348
    %v350 = vmul.f32 %v343, %v349
    %v351 = vmul.f32 %v350, %v267
    %v352 = vadd.f32 %v351, %v268
    %v353 = vmax.f32 %v352, 0.0
    %v354 = vld [vmem:[#allocation2 + $0x18] sm:$0xff]
    %v355 = vld [vmem:[#allocation2 + $0x48] sm:$0xff]
    %v356 = vld [vmem:[#allocation2 + $0x78] sm:$0xff]
    %v357 = vld [vmem:[#allocation2 + $0xa8] sm:$0xff]
    %v358 = vld [vmem:[#allocation2 + $0xd8] sm:$0xff]
    %v359 = vld [vmem:[#allocation2 + $0x108] sm:$0xff]
    %v360 = vld [vmem:[#allocation2 + $0x138] sm:$0xff]
    %v361 = vld [vmem:[#allocation2 + $0x168] sm:$0xff]
    %v362 = vld [vmem:[#allocation2 + $0x198] sm:$0xff]
    %v363 = vld [vmem:[#allocation2 + $0x1c8] sm:$0xff]
    %v364 = vld [vmem:[#allocation2 + $0x1f8] sm:$0xff]
    %v365 = vld [vmem:[#allocation2 + $0x228] sm:$0xff]
    %v366 = vld [vmem:[#allocation2 + $0x258] sm:$0xff]
    %v367 = vld [vmem:[#allocation2 + $0x288] sm:$0xff]
    %v368 = vld [vmem:[#allocation2 + $0x2b8] sm:$0xff]
    %v369 = vld [vmem:[#allocation2 + $0x2e8] sm:$0xff]
    %v370 = vld [vmem:[#allocation2 + $0x331] ss:$0 sm:$0xff]
    %v371 = vld [vmem:[#allocation2 + $0x332] ss:$0 sm:$0xff]
    %v372 = vld [vmem:[#allocation2 + $0x333] ss:$0 sm:$0xff]
    %373 = vmatprep.subr.mxu0 0.0
    %374 = vmatpush1.msra.mxu0 %v369
    %375 = vmatprep.subr.mxu0 0.0
    %376 = vmatpush1.msra.mxu0 %v368
    %377 = vmatprep.subr.mxu0 0.0
    %378 = vmatpush1.msra.mxu0 %v367
    %379 = vmatprep.subr.mxu0 0.0
    %380 = vmatpush1.msra.mxu0 %v366
    %381 = vmatprep.subr.mxu0 0.0
    %382 = vmatpush1.msra.mxu0 %v365
    %383 = vmatprep.subr.mxu0 0.0
    %384 = vmatpush1.msra.mxu0 %v364
    %385 = vmatprep.subr.mxu0 0.0
    %386 = vmatpush1.msra.mxu0 %v363
    %387 = vmatprep.subr.mxu0 0.0
    %388 = vmatpush1.msra.mxu0 %v362
    %389 = vmatprep.subr.mxu0 0.0
    %390 = vmatpush1.msra.mxu0 %v361
    %391 = vmatprep.subr.mxu0 0.0
    %392 = vmatpush1.msra.mxu0 %v360
    %393 = vmatprep.subr.mxu0 0.0
    %394 = vmatpush1.msra.mxu0 %v359
    %395 = vmatprep.subr.mxu0 0.0
    %396 = vmatpush1.msra.mxu0 %v358
    %397 = vmatprep.subr.mxu0 0.0
    %398 = vmatpush1.msra.mxu0 %v357
    %399 = vmatprep.subr.mxu0 0.0
    %400 = vmatpush1.msra.mxu0 %v356
    %401 = vmatprep.subr.mxu0 0.0
    %402 = vmatpush1.msra.mxu0 %v355
    %403 = vmatprep.subr.mxu0 0.0
    %404 = vmatpush1.msra.mxu0 %v354
    %405 = vmatprep.subr.mxu0 0.0
    %406 = vmatpush2.msra.mxu0 0.0
    %407 = vmatprep.subr.mxu0 0.0
    %408 = vmatpush2.msra.mxu0 0.0
    %409 = vmatprep.subr.mxu0 0.0
    %410 = vmatpush2.msra.mxu0 0.0
    %411 = vmatprep.subr.mxu0 0.0
    %412 = vmatpush2.msra.mxu0 0.0
    %413 = vmatprep.subr.mxu0 0.0
    %414 = vmatpush2.msra.mxu0 0.0
    %415 = vmatprep.subr.mxu0 0.0
    %416 = vmatpush2.msra.mxu0 0.0
    %417 = vmatprep.subr.mxu0 0.0
    %418 = vmatpush2.msra.mxu0 0.0
    %419 = vmatprep.subr.mxu0 0.0
    %420 = vmatpush2.msra.mxu0 0.0
    %421 = vmatprep.subr.mxu0 0.0
    %422 = vmatpush2.msra.mxu0 0.0
    %423 = vmatprep.subr.mxu0 0.0
    %424 = vmatpush2.msra.mxu0 0.0
    %425 = vmatprep.subr.mxu0 0.0
    %426 = vmatpush2.msra.mxu0 0.0
    %427 = vmatprep.subr.mxu0 0.0
    %428 = vmatpush2.msra.mxu0 0.0
    %429 = vmatprep.subr.mxu0 0.0
    %430 = vmatpush2.msra.mxu0 0.0
    %431 = vmatprep.subr.mxu0 0.0
    %432 = vmatpush2.msra.mxu0 0.0
    %433 = vmatprep.subr.mxu0 0.0
    %434 = vmatpush2.msra.mxu0 0.0
    %435 = vmatprep.subr.mxu0 0.0
    %436 = vmatpush2.msra.mxu0 0.0
    %437 = vmatprep.mubr.f32.mxu0 0.0
    %438 = vmatmul.mubr.f32.gmra.mxu0 %v353
    %v439 = vpop.f32.mrf.mxu0
    %v440 = vadd.f32 %v370, %v439
    %v441 = vpop.f32.mrf.mxu0
    %442 = vdwg.mxu0
    %443 = vadd.xlane.f32.xlu0 %v440
    %v444 = vpop.xlane.xlu0 %443
    %v445 = vmul.f32 %v444, 0.0625
    %v446 = vsub.f32 %v440, %v445
    %vm447 = vcmp.lt.s32.totalorder %v31, 16
    %v448 = vsel %vm447, %v446, 0.0
    %v449 = vmul.f32 %v448, %v448
    %450 = vadd.xlane.f32.xlu0 %v449
    %v451 = vpop.xlane.xlu0 %450
    %v452 = vmul.f32 %v451, 0.0625
    %v453 = vadd.f32 %v452, 1e-05
    %v454 = vrsqrt.pop %v453
    %v455 = vmul.f32 %v448, %v454
    %v456 = vmul.f32 %v455, %v371
    %v457 = vadd.f32 %v456, %v372
    %v458 = vmax.f32 %v457, 0.0
    %v459 = vld [vmem:[#allocation2 + $0x20] sm:$0xff]
    %v460 = vld [vmem:[#allocation2 + $0x50] sm:$0xff]
    %v461 = vld [vmem:[#allocation2 + $0x80] sm:$0xff]
    %v462 = vld [vmem:[#allocation2 + $0xb0] sm:$0xff]
    %v463 = vld [vmem:[#allocation2 + $0xe0] sm:$0xff]
    %v464 = vld [vmem:[#allocation2 + $0x110] sm:$0xff]
    %v465 = vld [vmem:[#allocation2 + $0x140] sm:$0xff]
    %v466 = vld [vmem:[#allocation2 + $0x170] sm:$0xff]
    %v467 = vld [vmem:[#allocation2 + $0x1a0] sm:$0xff]
    %v468 = vld [vmem:[#allocation2 + $0x1d0] sm:$0xff]
    %v469 = vld [vmem:[#allocation2 + $0x200] sm:$0xff]
    %v470 = vld [vmem:[#allocation2 + $0x230] sm:$0xff]
    %v471 = vld [vmem:[#allocation2 + $0x260] sm:$0xff]
    %v472 = vld [vmem:[#allocation2 + $0x290] sm:$0xff]
    %v473 = vld [vmem:[#allocation2 + $0x2c0] sm:$0xff]
    %v474 = vld [vmem:[#allocation2 + $0x2f0] sm:$0xff]
    %v475 = vld [vmem:[#allocation2 + $0x334] ss:$0 sm:$0xff]
    %v476 = vld [vmem:[#allocation2 + $0x335] ss:$0 sm:$0xff]
    %v477 = vld [vmem:[#allocation2 + $0x336] ss:$0 sm:$0xff]
    %478 = vmatprep.subr.mxu0 0.0
    %479 = vmatpush1.msra.mxu0 %v474
    %480 = vmatprep.subr.mxu0 0.0
    %481 = vmatpush1.msra.mxu0 %v473
    %482 = vmatprep.subr.mxu0 0.0
    %483 = vmatpush1.msra.mxu0 %v472
    %484 = vmatprep.subr.mxu0 0.0
    %485 = vmatpush1.msra.mxu0 %v471
    %486 = vmatprep.subr.mxu0 0.0
    %487 = vmatpush1.msra.mxu0 %v470
    %488 = vmatprep.subr.mxu0 0.0
    %489 = vmatpush1.msra.mxu0 %v469
    %490 = vmatprep.subr.mxu0 0.0
    %491 = vmatpush1.msra.mxu0 %v468
    %492 = vmatprep.subr.mxu0 0.0
    %493 = vmatpush1.msra.mxu0 %v467
    %494 = vmatprep.subr.mxu0 0.0
    %495 = vmatpush1.msra.mxu0 %v466
    %496 = vmatprep.subr.mxu0 0.0
    %497 = vmatpush1.msra.mxu0 %v465
    %498 = vmatprep.subr.mxu0 0.0
    %499 = vmatpush1.msra.mxu0 %v464
    %500 = vmatprep.subr.mxu0 0.0
    %501 = vmatpush1.msra.mxu0 %v463
    %502 = vmatprep.subr.mxu0 0.0
    %503 = vmatpush1.msra.mxu0 %v462
    %504 = vmatprep.subr.mxu0 0.0
    %505 = vmatpush1.msra.mxu0 %v461
    %506 = vmatprep.subr.mxu0 0.0
    %507 = vmatpush1.msra.mxu0 %v460
    %508 = vmatprep.subr.mxu0 0.0
    %509 = vmatpush1.msra.mxu0 %v459
    %510 = vmatprep.subr.mxu0 0.0
    %511 = vmatpush2.msra.mxu0 0.0
    %512 = vmatprep.subr.mxu0 0.0
    %513 = vmatpush2.msra.mxu0 0.0
    %514 = vmatprep.subr.mxu0 0.0
    %515 = vmatpush2.msra.mxu0 0.0
    %516 = vmatprep.subr.mxu0 0.0
    %517 = vmatpush2.msra.mxu0 0.0
    %518 = vmatprep.subr.mxu0 0.0
    %519 = vmatpush2.msra.mxu0 0.0
    %520 = vmatprep.subr.mxu0 0.0
    %521 = vmatpush2.msra.mxu0 0.0
    %522 = vmatprep.subr.mxu0 0.0
    %523 = vmatpush2.msra.mxu0 0.0
    %524 = vmatprep.subr.mxu0 0.0
    %525 = vmatpush2.msra.mxu0 0.0
    %526 = vmatprep.subr.mxu0 0.0
    %527 = vmatpush2.msra.mxu0 0.0
    %528 = vmatprep.subr.mxu0 0.0
    %529 = vmatpush2.msra.mxu0 0.0
    %530 = vmatprep.subr.mxu0 0.0
    %531 = vmatpush2.msra.mxu0 0.0
    %532 = vmatprep.subr.mxu0 0.0
    %533 = vmatpush2.msra.mxu0 0.0
    %534 = vmatprep.subr.mxu0 0.0
    %535 = vmatpush2.msra.mxu0 0.0
    %536 = vmatprep.subr.mxu0 0.0
    %537 = vmatpush2.msra.mxu0 0.0
    %538 = vmatprep.subr.mxu0 0.0
    %539 = vmatpush2.msra.mxu0 0.0
    %540 = vmatprep.subr.mxu0 0.0
    %541 = vmatpush2.msra.mxu0 0.0
    %542 = vmatprep.mubr.f32.mxu0 0.0
    %543 = vmatmul.mubr.f32.gmra.mxu0 %v458
    %v544 = vpop.f32.mrf.mxu0
    %v545 = vadd.f32 %v475, %v544
    %v546 = vpop.f32.mrf.mxu0
    %547 = vdwg.mxu0
    %548 = vadd.xlane.f32.xlu0 %v545
    %v549 = vpop.xlane.xlu0 %548
    %v550 = vmul.f32 %v549, 0.125
    %v551 = vsub.f32 %v545, %v550
    %v552 = vsel %vm32, %v551, 0.0
    %v553 = vmul.f32 %v552, %v552
    %554 = vadd.xlane.f32.xlu0 %v553
    %v555 = vpop.xlane.xlu0 %554
    %v556 = vmul.f32 %v555, 0.125
    %v557 = vadd.f32 %v556, 1e-05
    %v558 = vrsqrt.pop %v557
    %v559 = vmul.f32 %v552, %v558
    %v560 = vmul.f32 %v559, %v476
    %v561 = vadd.f32 %v560, %v477
    %v562 = vmax.f32 %v561, 0.0
    %v563 = vld [vmem:[#allocation2 + $0x28] sm:$0xff]
    %v564 = vld [vmem:[#allocation2 + $0x58] sm:$0xff]
    %v565 = vld [vmem:[#allocation2 + $0x88] sm:$0xff]
    %v566 = vld [vmem:[#allocation2 + $0xb8] sm:$0xff]
    %v567 = vld [vmem:[#allocation2 + $0xe8] sm:$0xff]
    %v568 = vld [vmem:[#allocation2 + $0x118] sm:$0xff]
    %v569 = vld [vmem:[#allocation2 + $0x148] sm:$0xff]
    %v570 = vld [vmem:[#allocation2 + $0x178] sm:$0xff]
    %v571 = vld [vmem:[#allocation2 + $0x1a8] sm:$0xff]
    %v572 = vld [vmem:[#allocation2 + $0x1d8] sm:$0xff]
    %v573 = vld [vmem:[#allocation2 + $0x208] sm:$0xff]
    %v574 = vld [vmem:[#allocation2 + $0x238] sm:$0xff]
    %v575 = vld [vmem:[#allocation2 + $0x268] sm:$0xff]
    %v576 = vld [vmem:[#allocation2 + $0x298] sm:$0xff]
    %v577 = vld [vmem:[#allocation2 + $0x2c8] sm:$0xff]
    %v578 = vld [vmem:[#allocation2 + $0x2f8] sm:$0xff]
    %v579 = vld [vmem:[#allocation2 + $0x337] ss:$0 sm:$0xff]
    %580 = vmatprep.subr.mxu0 0.0
    %581 = vmatpush1.msra.mxu0 %v578
    %582 = vmatprep.subr.mxu0 0.0
    %583 = vmatpush1.msra.mxu0 %v577
    %584 = vmatprep.subr.mxu0 0.0
    %585 = vmatpush1.msra.mxu0 %v576
    %586 = vmatprep.subr.mxu0 0.0
    %587 = vmatpush1.msra.mxu0 %v575
    %588 = vmatprep.subr.mxu0 0.0
    %589 = vmatpush1.msra.mxu0 %v574
    %590 = vmatprep.subr.mxu0 0.0
    %591 = vmatpush1.msra.mxu0 %v573
    %592 = vmatprep.subr.mxu0 0.0
    %593 = vmatpush1.msra.mxu0 %v572
    %594 = vmatprep.subr.mxu0 0.0
    %595 = vmatpush1.msra.mxu0 %v571
    %596 = vmatprep.subr.mxu0 0.0
    %597 = vmatpush1.msra.mxu0 %v570
    %598 = vmatprep.subr.mxu0 0.0
    %599 = vmatpush1.msra.mxu0 %v569
    %600 = vmatprep.subr.mxu0 0.0
    %601 = vmatpush1.msra.mxu0 %v568
    %602 = vmatprep.subr.mxu0 0.0
    %603 = vmatpush1.msra.mxu0 %v567
    %604 = vmatprep.subr.mxu0 0.0
    %605 = vmatpush1.msra.mxu0 %v566
    %606 = vmatprep.subr.mxu0 0.0
    %607 = vmatpush1.msra.mxu0 %v565
    %608 = vmatprep.subr.mxu0 0.0
    %609 = vmatpush1.msra.mxu0 %v564
    %610 = vmatprep.subr.mxu0 0.0
    %611 = vmatpush1.msra.mxu0 %v563
    %612 = vmatprep.subr.mxu0 0.0
    %613 = vmatpush2.msra.mxu0 0.0
    %614 = vmatprep.subr.mxu0 0.0
    %615 = vmatpush2.msra.mxu0 0.0
    %616 = vmatprep.subr.mxu0 0.0
    %617 = vmatpush2.msra.mxu0 0.0
    %618 = vmatprep.subr.mxu0 0.0
    %619 = vmatpush2.msra.mxu0 0.0
    %620 = vmatprep.subr.mxu0 0.0
    %621 = vmatpush2.msra.mxu0 0.0
    %622 = vmatprep.subr.mxu0 0.0
    %623 = vmatpush2.msra.mxu0 0.0
    %624 = vmatprep.subr.mxu0 0.0
    %625 = vmatpush2.msra.mxu0 0.0
    %626 = vmatprep.subr.mxu0 0.0
    %627 = vmatpush2.msra.mxu0 0.0
    %628 = vmatprep.subr.mxu0 0.0
    %629 = vmatpush2.msra.mxu0 0.0
    %630 = vmatprep.subr.mxu0 0.0
    %631 = vmatpush2.msra.mxu0 0.0
    %632 = vmatprep.subr.mxu0 0.0
    %633 = vmatpush2.msra.mxu0 0.0
    %634 = vmatprep.subr.mxu0 0.0
    %635 = vmatpush2.msra.mxu0 0.0
    %636 = vmatprep.subr.mxu0 0.0
    %637 = vmatpush2.msra.mxu0 0.0
    %638 = vmatprep.subr.mxu0 0.0
    %639 = vmatpush2.msra.mxu0 0.0
    %640 = vmatprep.subr.mxu0 0.0
    %641 = vmatpush2.msra.mxu0 0.0
    %642 = vmatprep.subr.mxu0 0.0
    %643 = vmatpush2.msra.mxu0 0.0
    %644 = vmatprep.mubr.f32.mxu0 0.0
    %645 = vmatmul.mubr.f32.gmra.mxu0 %v562
    %v646 = vpop.f32.mrf.mxu0
    %v647 = vadd.f32 %v579, %v646
    %v648 = vpop.f32.mrf.mxu0
    %649 = vdwg.mxu0
    %v650 = vtanh.pop %v647
    %651 = vst [vmem:[%s2] sm:$0xff] %v650
    // Predicated region
    $region14: #{triple_pendulum_actor.1} parent=1 // pred_check
      _
    $region15: #{triple_pendulum_actor.1} parent=1 // pred_check_branch
      %653 = sbr.rel (0) target = $region17
    $region16: #{triple_pendulum_actor.1} parent=1 // pred_region
      _
    $region17: #{triple_pendulum_actor.1} parent=1 // pred_fallthru
      _
    // Predicated region
    $region18: #{triple_pendulum_actor.1} parent=1 // pred_check
      _
    $region19: #{triple_pendulum_actor.1} parent=1 // pred_check_branch
      %655 = sbr.rel (0) target = $region21
    $region20: #{triple_pendulum_actor.1} parent=1 // pred_region
      _
    $region21: #{triple_pendulum_actor.1} parent=1 // pred_fallthru
      _
    %656 = vsyncpa [#allocation3], 1

</llo_original>
